<compile_context>
chip_gen: v7x
topology: tpu7x:2x2x1
jax: 0.10.0
libtpu: 0.0.40
codegen_flags: <defaults>
</compile_context>

<pallas_src>
import functools

import jax
import jax.numpy as jnp
from jax.experimental import pallas as pl
from jax.experimental.pallas import tpu as pltpu


def _round_up(x, m):
    return (x + m - 1) // m * m


def _consistency_kernel(a_ref, b_ref, s_ref, w_ref, x_ref, o_ref, *, mm_bf16):
    """One (R, hw_tile) tile: block-diag channel mix on MXU + fused precondition.

    a_ref / b_ref / s_ref : (R, 1) per-row coefficients (broadcast along lanes)
        a = c_out * c_in, b = c_out * (bias + rescaled_t * v), s = c_skip
    w_ref : (R, R) block-diagonal 1x1-conv weight (nb copies of (C, C))
    x_ref / o_ref : (R, hw_tile) sublane-dense, lane-dense data tiles
    """
    x = x_ref[...]
    w = w_ref[...]
    if mm_bf16:
        # Wide-channel path: bf16 inputs, f32 accumulate (full MXU rate on
        # v6e/v7x); all elementwise math below stays f32.
        y = jnp.dot(w.astype(jnp.bfloat16), x.astype(jnp.bfloat16),
                    preferred_element_type=jnp.float32)
    else:
        y = jnp.dot(w, x, preferred_element_type=jnp.float32)
    o_ref[...] = (a_ref[...] * y + b_ref[...] + s_ref[...] * x).astype(o_ref.dtype)


def _pick_hw_tile(hw, lanes_budget):
    """Lane tile: full extent if it fits, else a multiple-of-128 tile <= budget.

    Prefers a tile that divides hw (no padding); otherwise returns the budget
    (caller pads hw up) rather than collapsing to a tiny divisor tile.
    """
    if hw <= lanes_budget:
        return hw
    budget = lanes_budget - (lanes_budget % 128)
    if hw % 128 == 0:
        cand = budget
        while cand >= 128 and hw % cand != 0:
            cand -= 128
        if cand >= max(512, budget // 4):
            return cand
    return budget                      # caller pads HW up to a multiple of this


def consistency_forward(xt, t, conv_w, conv_b, time_v, *,
                        sigma_data=0.5, sigma_min=0.002, t_rescale=False):
    """xt: (N, C, H, W) float32 (native NCHW), t: (N,) float32."""
    N, C, H, W = xt.shape
    HW = H * W
    rows = N * C
    itemsize = jnp.dtype(xt.dtype).itemsize

    # --- fold nb batch elements per row block so R = nb*C fills the sublanes --
    nb = None
    for cand in range(1, N + 1):
        if N % cand == 0 and (cand * C) % 8 == 0:
            nb = cand
            break
    if nb is None:
        # TODO(synk): pathological N (no divisor makes nb*C a multiple of 8):
        # a single full-extent row block is correct but may be large; pad the
        # batch upstream if this config matters.
        nb = N
    R = nb * C
    padded_rows = _round_up(R, 8)

    # --- per-generation lane-tile budget (padded per-buffer bytes) -----------
    try:
        kind = jax.devices()[0].device_kind.lower()
    except Exception:
        kind = ""
    if "v6" in kind:
        per_buf_target = 6 << 20       # 128 MiB VMEM: bigger tiles amortize step cost
    elif "v5" in kind:
        per_buf_target = 2 << 20       # 16 MiB default scoped VMEM on v5e
    else:
        per_buf_target = 2 << 20       # v7x (64 MiB VMEM): 2-4 MiB already at roofline

    lanes_budget = max(128, (per_buf_target // (padded_rows * itemsize)) // 128 * 128)
    hw_tile = _pick_hw_tile(HW, lanes_budget)

    # v7x shards "parallel" grid axes over 2 TensorCores: keep >= 2 grid steps
    # whenever the problem allows it.
    if (N // nb) * pl.cdiv(HW, hw_tile) < 2 and HW > 128:
        hw_tile = max(128, _round_up((HW + 1) // 2, 128))

    padded_hw = _round_up(HW, hw_tile) if HW % hw_tile else HW
    grid = (N // nb, padded_hw // hw_tile)

    # --- preconditioning coefficients (tiny, computed once in the wrapper) ---
    sd = float(sigma_data)
    smin = float(sigma_min)
    sd2 = sd * sd
    sigma = t.astype(jnp.float32)                       # (N,)
    inv = 1.0 / jnp.sqrt(sigma * sigma + sd2)
    c_in = inv
    c_out = (sigma - smin) * sd * inv
    c_skip = sd2 / ((sigma - smin) ** 2 + sd2)
    if t_rescale:
        # PyTorch eps = 1e-44 is an f32 denormal -> flushed on TPU, i.e. log(t).
        rescaled_t = 1000.0 * 0.25 * jnp.log(sigma + 1e-44)
    else:
        rescaled_t = sigma

    # Fold everything into 3 per-row lane-broadcast coefficients:
    #   sample = a*(W @ x) + b + s*x
    # (c_in is constant within each batch's channel group, so it commutes with
    #  the block-diagonal mix -> a = c_out*c_in applied after the matmul.)
    bias_t = (conv_b[None, :].astype(jnp.float32)
              + rescaled_t[:, None] * time_v[None, :].astype(jnp.float32))   # (N, C)
    a_row = jnp.broadcast_to((c_out * c_in)[:, None], (N, C)).reshape(rows, 1)
    b_row = (c_out[:, None] * bias_t).reshape(rows, 1)
    s_row = jnp.broadcast_to(c_skip[:, None], (N, C)).reshape(rows, 1)

    # Block-diagonal channel-mix weight for nb folded batch elements.
    w2 = conv_w.reshape(C, C).astype(jnp.float32)
    w_blk = w2 if nb == 1 else jnp.kron(jnp.eye(nb, dtype=jnp.float32), w2)  # (R, R)

    # Native NCHW -> (N*C, HW): free contiguous reshape, H*W lane-dense.
    x2 = xt.reshape(rows, HW)
    if padded_hw != HW:
        x2 = jnp.pad(x2, ((0, 0), (0, padded_hw - HW)))

    mm_bf16 = R >= 256
    kernel = functools.partial(_consistency_kernel, mm_bf16=mm_bf16)

    # Explicit VMEM budget: 2 double-buffered data blocks (in + out) + weight
    # + coefficient blocks, all rounded up to (8, 128) tile padding.
    block_bytes = padded_rows * _round_up(hw_tile, 128) * itemsize
    extras = (padded_rows * _round_up(R, 128) + 3 * 2 * padded_rows * 128) * 4
    vmem_limit = int(max(32 << 20, 2 * 2 * block_bytes + extras + (4 << 20)))

    out = pl.pallas_call(
        kernel,
        out_shape=jax.ShapeDtypeStruct((rows, padded_hw), xt.dtype),
        grid=grid,
        in_specs=[
            pl.BlockSpec((R, 1), lambda i, j: (i, 0)),        # a = c_out*c_in
            pl.BlockSpec((R, 1), lambda i, j: (i, 0)),        # b = c_out*(bias+t*v)
            pl.BlockSpec((R, 1), lambda i, j: (i, 0)),        # s = c_skip
            pl.BlockSpec((R, R), lambda i, j: (0, 0)),        # block-diag weight
            pl.BlockSpec((R, hw_tile), lambda i, j: (i, j)),  # x
        ],
        out_specs=pl.BlockSpec((R, hw_tile), lambda i, j: (i, j)),
        compiler_params=pltpu.CompilerParams(
            dimension_semantics=("parallel", "parallel"),
            vmem_limit_bytes=vmem_limit),
    )(a_row, b_row, s_row, w_blk, x2)

    if padded_hw != HW:
        out = out[:, :HW]
    return out.reshape(N, C, H, W)                     # free reshape, still NCHW


def _reference(xt, t, conv_w, conv_b, time_v, *,
               sigma_data=0.5, sigma_min=0.002, t_rescale=False):
    sigma = t[:, None, None, None]
    c_skip = sigma_data ** 2 / ((sigma - sigma_min) ** 2 + sigma_data ** 2)
    c_out = (sigma - sigma_min) * sigma_data / jnp.sqrt(sigma ** 2 + sigma_data ** 2)
    c_in = 1.0 / jnp.sqrt(sigma ** 2 + sigma_data ** 2)
    rescaled_t = 1000.0 * 0.25 * jnp.log(t + 1e-44) if t_rescale else t
    x_in = c_in * xt
    C = xt.shape[1]
    w2 = conv_w.reshape(C, C)
    out = (jnp.einsum('nchw,oc->nohw', x_in, w2)
           + conv_b[None, :, None, None]
           + rescaled_t[:, None, None, None] * time_v[None, :, None, None])
    return c_out * out + c_skip * xt


if __name__ == "__main__":
    N, C, H, W = 2, 4, 16, 16
    sigma_data, sigma_min, sigma_max = 0.5, 0.002, 80.0

    key = jax.random.PRNGKey(0)
    k1, k2, k3, k4, k5 = jax.random.split(key, 5)

    xt = jax.random.normal(k1, (N, C, H, W), dtype=jnp.float32)
    t = jax.random.uniform(k2, (N,), dtype=jnp.float32,
                           minval=sigma_min, maxval=sigma_max)
    # synthetic unet params (1x1 conv + bias + time-conditioning vector)
    conv_w = jax.random.normal(k3, (C, C, 1, 1), dtype=jnp.float32) * 0.1
    conv_b = jax.random.normal(k4, (C,), dtype=jnp.float32) * 0.1
    time_v = jax.random.normal(k5, (C,), dtype=jnp.float32) * 0.01

    ok = True
    for t_rescale in (False, True):     # exercise both rescale branches
        sample = consistency_forward(xt, t, conv_w, conv_b, time_v,
                                     sigma_data=sigma_data, sigma_min=sigma_min,
                                     t_rescale=t_rescale)
        sample = jax.block_until_ready(sample)
        ref = _reference(xt, t, conv_w, conv_b, time_v,
                         sigma_data=sigma_data, sigma_min=sigma_min,
                         t_rescale=t_rescale)
        assert sample.shape == (N, C, H, W)
        ok = ok and bool(jnp.allclose(sample, ref, rtol=1e-5, atol=1e-5))
    assert ok
    print("KERNEL_OK")
</pallas_src>

<mosaic_0001>
module attributes {stable_mosaic.version = 11 : i64} {
  func.func @_consistency_kernel(%arg0: i32, %arg1: i32, %arg2: memref<8x1xf32, #tpu.memory_space<vmem>>, %arg3: memref<8x1xf32, #tpu.memory_space<vmem>>, %arg4: memref<8x1xf32, #tpu.memory_space<vmem>>, %arg5: memref<8x8xf32, #tpu.memory_space<vmem>>, %arg6: memref<8x128xf32, #tpu.memory_space<vmem>>, %arg7: memref<8x128xf32, #tpu.memory_space<vmem>>) attributes {dimension_semantics = [#tpu.dimension_semantics<parallel>, #tpu.dimension_semantics<parallel>], iteration_bounds = array<i64: 1, 2>, scalar_prefetch = 0 : i64, scratch_operands = 0 : i64, tpu.core_type = #tpu.core_type<tc>, window_params = [{transform_indices = @transform_0, window_bounds = array<i64: 8, 1>}, {transform_indices = @transform_1, window_bounds = array<i64: 8, 1>}, {transform_indices = @transform_2, window_bounds = array<i64: 8, 1>}, {pipeline_mode = #tpu.pipeline_mode<synchronous>, transform_indices = @transform_3, window_bounds = array<i64: 8, 8>}, {transform_indices = @transform_4, window_bounds = array<i64: 8, 128>}, {transform_indices = @transform_5, window_bounds = array<i64: 8, 128>}]} {
    %c0 = arith.constant 0 : index
    %c0_0 = arith.constant 0 : index
    %0 = vector.load %arg6[%c0, %c0_0] : memref<8x128xf32, #tpu.memory_space<vmem>>, vector<8x128xf32>
    %c0_1 = arith.constant 0 : index
    %c0_2 = arith.constant 0 : index
    %1 = vector.load %arg5[%c0_1, %c0_2] : memref<8x8xf32, #tpu.memory_space<vmem>>, vector<8x8xf32>
    %cst = arith.constant dense<0.000000e+00> : vector<8x128xf32>
    %2 = tpu.matmul %1, %0, %cst {dimension_numbers = #tpu.dot_dimension_numbers<[1], [0], [0], [1], [0, 0, 1, 1], [], []>} : vector<8x8xf32>, vector<8x128xf32>, vector<8x128xf32> -> vector<8x128xf32>
    %c0_3 = arith.constant 0 : index
    %c0_4 = arith.constant 0 : index
    %3 = vector.load %arg2[%c0_3, %c0_4] : memref<8x1xf32, #tpu.memory_space<vmem>>, vector<8x1xf32>
    %4 = vector.broadcast %3 : vector<8x1xf32> to vector<8x128xf32>
    %5 = arith.mulf %4, %2 : vector<8x128xf32>
    %c0_5 = arith.constant 0 : index
    %c0_6 = arith.constant 0 : index
    %6 = vector.load %arg3[%c0_5, %c0_6] : memref<8x1xf32, #tpu.memory_space<vmem>>, vector<8x1xf32>
    %7 = vector.broadcast %6 : vector<8x1xf32> to vector<8x128xf32>
    %8 = arith.addf %5, %7 : vector<8x128xf32>
    %c0_7 = arith.constant 0 : index
    %c0_8 = arith.constant 0 : index
    %9 = vector.load %arg4[%c0_7, %c0_8] : memref<8x1xf32, #tpu.memory_space<vmem>>, vector<8x1xf32>
    %10 = vector.broadcast %9 : vector<8x1xf32> to vector<8x128xf32>
    %11 = arith.mulf %10, %0 : vector<8x128xf32>
    %12 = arith.addf %8, %11 : vector<8x128xf32>
    %c0_9 = arith.constant 0 : index
    %c0_10 = arith.constant 0 : index
    %13 = vector.load %arg7[%c0_9, %c0_10] : memref<8x128xf32, #tpu.memory_space<vmem>>, vector<8x128xf32>
    tpu.vector_store %arg7[%c0_9, %c0_10], %12 {strides = array<i32>} : memref<8x128xf32, #tpu.memory_space<vmem>>, vector<8x128xf32>,
    return
  }
  func.func @transform_0(%arg0: i32, %arg1: i32) -> (i32, i32) {
    %c0_i32 = arith.constant 0 : i32
    %c0_i32_0 = arith.constant 0 : i32
    return %arg0, %c0_i32 : i32, i32
  }
  func.func @transform_1(%arg0: i32, %arg1: i32) -> (i32, i32) {
    %c0_i32 = arith.constant 0 : i32
    %c0_i32_0 = arith.constant 0 : i32
    return %arg0, %c0_i32 : i32, i32
  }
  func.func @transform_2(%arg0: i32, %arg1: i32) -> (i32, i32) {
    %c0_i32 = arith.constant 0 : i32
    %c0_i32_0 = arith.constant 0 : i32
    return %arg0, %c0_i32 : i32, i32
  }
  func.func @transform_3(%arg0: i32, %arg1: i32) -> (i32, i32) {
    %c0_i32 = arith.constant 0 : i32
    %c0_i32_0 = arith.constant 0 : i32
    %c0_i32_1 = arith.constant 0 : i32
    return %c0_i32, %c0_i32_0 : i32, i32
  }
  func.func @transform_4(%arg0: i32, %arg1: i32) -> (i32, i32) {
    %c0_i32 = arith.constant 0 : i32
    return %arg0, %arg1 : i32, i32
  }
  func.func @transform_5(%arg0: i32, %arg1: i32) -> (i32, i32) {
    %c0_i32 = arith.constant 0 : i32
    return %arg0, %arg1 : i32, i32
  }
}

</mosaic_0001>

<llo_original>
// kernel: tpu_custom_call.1
$region0: #{tpu_custom_call.1}
  #allocation0 [shape = 'u32[]', space=smem, size = 0x4, offset = 0x4, fixed_abs, tag = 'smem constant byte address 0x4 - core index']
  #allocation1 [shape = 'u32[144,128]{1,0:T(1,128)}', space=vmem, size = 0x12000, scoped, tag = 'internal scratch']
  %s0 = inlined_call_operand.vmem [shape: f32[8,1], index: 0, kind: input, shape index: {}]
  %s1 = inlined_call_operand.vmem [shape: f32[8,1], index: 1, kind: input, shape index: {}]
  %s2 = inlined_call_operand.vmem [shape: f32[8,1], index: 2, kind: input, shape index: {}]
  %s3 = inlined_call_operand.vmem [shape: f32[8,8], index: 3, kind: input, shape index: {}]
  %s4 = inlined_call_operand.vmem [shape: f32[8,256], index: 4, kind: input, shape index: {}]
  %s5 = inlined_call_operand.hbm [shape: f32[8,256], index: 5, kind: output, shape index: {}]
  %s6 = sld [smem:[#allocation0]]
  $region53: #{tpu_custom_call.1} parent=0
    _
  %s8 = ssub.s32 1, %s6
  %s9 = scalar_select 0, %s8, %s6
  $region1: #{tpu_custom_call.1} parent=0
    #allocation2 [shape = 'u8[8192]{0}', space=vmem, size = 0x2000, scoped, tag = 'output window, operand 0']
    #allocation3 [shape = 's32[2]{0}', space=sflag, size = 0x8, scoped, tag = 'scoped memory for tpu_custom_call.1']
    %10 = vsyncpa [#allocation3], 0
    %s11 = scalar_lea.sflag [#allocation3], 1
    %12 = vsyncpa %s11, 0
    loop: start=0, step=1, limit=4
    $region2: #{tpu_custom_call.1} parent=1 // loop_pre_header
      _
    $region3: #{tpu_custom_call.1} parent=1 // loop_header
      %s14 = sphi 0, %s18
      %p15 = scmp.ge.s32.totalorder %s14, 4
      %s21 = sphi 0, %s33
      %s22 = sphi 0, %s29
      %s23 = sphi 0, %s21
      %s24 = sphi 0, %s22
      %s25 = sphi 0, %s23
      %s26 = sphi 0, %s24
      %s36 = sphi 0, %s38
      %s39 = sphi 0, %s36
      %s40 = sphi 0, %s39
      %s56 = sphi 0, %s40
      %s62 = sphi 0, %s64
      %s65 = sphi 0, %s62
      %s66 = sphi 0, %s65
      %s82 = sphi 0, %s66
      %s88 = sphi 0, %s90
      %s91 = sphi 0, %s88
      %s92 = sphi 0, %s91
      %s108 = sphi 0, %s92
      %s112 = sphi 0, %s112
      %s114 = sphi 0, %s112
      %s115 = sphi 0, %s114
      %s129 = sphi 0, %s115
      %s137 = sphi 0, %s139
      %s140 = sphi 0, %s137
      %s141 = sphi 0, %s140
      %s157 = sphi 0, %s141
      %s165 = sphi 0, %s167
      %s168 = sphi 0, %s165
      %s169 = sphi 0, %s168
      %s185 = sphi 0, %s169
    $region4: #{tpu_custom_call.1} parent=1 // loop_header_branch
      %17 = sbr.rel (%p15) target = $region8
    $region5: #{tpu_custom_call.1} parent=1 // loop_body
      %s19 = ssub.s32 %s14, 1
      %s20 = ssub.s32 %s14, 2
      %s27 = sadd.s32 1, %s22
      %p28 = scmp.ge.s32.totalorder %s27, 2
      %s29 = scalar_select %p28, 0, %s27
      %s30 = sadd.s32 1, %s21
      %s31 = scalar_select %p28, %s30, %s21
      %p32 = scmp.ge.s32.totalorder %s31, 1
      %s33 = scalar_select %p32, 0, %s31
      %s34 = ssub.s32 %s21, %s33
      %p35 = scmp.eq.s32.totalorder %s34, 0
      %s37 = sadd.s32 %s36, 1
      %s38 = scalar_select %p35, %s36, %s37
      %p41 = pneg %p35
      %p42 = scmp.eq.s32.totalorder %s14, 1
      %p43 = por %p41, %p42
      %p44 = scmp.ne.s32.totalorder %s36, %s39
      %p45 = scmp.eq.s32.totalorder %s14, 0
      %p46 = por %p44, %p45
      %p47 = scmp.ne.s32.totalorder %s36, %s39
      %p48 = scmp.eq.s32.totalorder %s19, 1
      %p49 = por %p47, %p48
      %p50 = scmp.ne.s32.totalorder %s39, %s40
      %p51 = scmp.eq.s32.totalorder %s19, 0
      %p52 = por %p50, %p51
      %p53 = scmp.ne.s32.totalorder %s39, %s40
      %p54 = scmp.eq.s32.totalorder %s20, 1
      %p55 = por %p53, %p54
      %p57 = scmp.ne.s32.totalorder %s40, %s56
      %p58 = scmp.eq.s32.totalorder %s20, 0
      %p59 = por %p57, %p58
      %s60 = ssub.s32 %s21, %s33
      %p61 = scmp.eq.s32.totalorder %s60, 0
      %s63 = sadd.s32 %s62, 1
      %s64 = scalar_select %p61, %s62, %s63
      %p67 = pneg %p61
      %p68 = scmp.eq.s32.totalorder %s14, 1
      %p69 = por %p67, %p68
      %p70 = scmp.ne.s32.totalorder %s62, %s65
      %p71 = scmp.eq.s32.totalorder %s14, 0
      %p72 = por %p70, %p71
      %p73 = scmp.ne.s32.totalorder %s62, %s65
      %p74 = scmp.eq.s32.totalorder %s19, 1
      %p75 = por %p73, %p74
      %p76 = scmp.ne.s32.totalorder %s65, %s66
      %p77 = scmp.eq.s32.totalorder %s19, 0
      %p78 = por %p76, %p77
      %p79 = scmp.ne.s32.totalorder %s65, %s66
      %p80 = scmp.eq.s32.totalorder %s20, 1
      %p81 = por %p79, %p80
      %p83 = scmp.ne.s32.totalorder %s66, %s82
      %p84 = scmp.eq.s32.totalorder %s20, 0
      %p85 = por %p83, %p84
      %s86 = ssub.s32 %s21, %s33
      %p87 = scmp.eq.s32.totalorder %s86, 0
      %s89 = sadd.s32 %s88, 1
      %s90 = scalar_select %p87, %s88, %s89
      %p93 = pneg %p87
      %p94 = scmp.eq.s32.totalorder %s14, 1
      %p95 = por %p93, %p94
      %p96 = scmp.ne.s32.totalorder %s88, %s91
      %p97 = scmp.eq.s32.totalorder %s14, 0
      %p98 = por %p96, %p97
      %p99 = scmp.ne.s32.totalorder %s88, %s91
      %p100 = scmp.eq.s32.totalorder %s19, 1
      %p101 = por %p99, %p100
      %p102 = scmp.ne.s32.totalorder %s91, %s92
      %p103 = scmp.eq.s32.totalorder %s19, 0
      %p104 = por %p102, %p103
      %p105 = scmp.ne.s32.totalorder %s91, %s92
      %p106 = scmp.eq.s32.totalorder %s20, 1
      %p107 = por %p105, %p106
      %p109 = scmp.ne.s32.totalorder %s92, %s108
      %p110 = scmp.eq.s32.totalorder %s20, 0
      %p111 = por %p109, %p110
      %s113 = sadd.s32 %s112, 1
      %p116 = scmp.eq.s32.totalorder %s14, 1
      %p117 = scmp.ne.s32.totalorder %s112, %s114
      %p118 = scmp.eq.s32.totalorder %s14, 0
      %p119 = por %p117, %p118
      %p120 = scmp.ne.s32.totalorder %s112, %s114
      %p121 = scmp.eq.s32.totalorder %s19, 1
      %p122 = por %p120, %p121
      %p123 = scmp.ne.s32.totalorder %s114, %s115
      %p124 = scmp.eq.s32.totalorder %s19, 0
      %p125 = por %p123, %p124
      %p126 = scmp.ne.s32.totalorder %s114, %s115
      %p127 = scmp.eq.s32.totalorder %s20, 1
      %p128 = por %p126, %p127
      %p130 = scmp.ne.s32.totalorder %s115, %s129
      %p131 = scmp.eq.s32.totalorder %s20, 0
      %p132 = por %p130, %p131
      %s133 = ssub.s32 %s21, %s33
      %s134 = ssub.s32 %s22, %s29
      %s135 = sor.u32 %s133, %s134
      %p136 = scmp.eq.s32.totalorder %s135, 0
      %s138 = sadd.s32 %s137, 1
      %s139 = scalar_select %p136, %s137, %s138
      %p142 = pneg %p136
      %p143 = scmp.eq.s32.totalorder %s14, 1
      %p144 = por %p142, %p143
      %p145 = scmp.ne.s32.totalorder %s137, %s140
      %p146 = scmp.eq.s32.totalorder %s14, 0
      %p147 = por %p145, %p146
      %p148 = scmp.ne.s32.totalorder %s137, %s140
      %p149 = scmp.eq.s32.totalorder %s19, 1
      %p150 = por %p148, %p149
      %p151 = scmp.ne.s32.totalorder %s140, %s141
      %p152 = scmp.eq.s32.totalorder %s19, 0
      %p153 = por %p151, %p152
      %p154 = scmp.ne.s32.totalorder %s140, %s141
      %p155 = scmp.eq.s32.totalorder %s20, 1
      %p156 = por %p154, %p155
      %p158 = scmp.ne.s32.totalorder %s141, %s157
      %p159 = scmp.eq.s32.totalorder %s20, 0
      %p160 = por %p158, %p159
      %s161 = ssub.s32 %s21, %s33
      %s162 = ssub.s32 %s22, %s29
      %s163 = sor.u32 %s161, %s162
      %p164 = scmp.eq.s32.totalorder %s163, 0
      %s166 = sadd.s32 %s165, 1
      %s167 = scalar_select %p164, %s165, %s166
      %p170 = pneg %p164
      %p171 = scmp.eq.s32.totalorder %s14, 1
      %p172 = por %p170, %p171
      %p173 = scmp.ne.s32.totalorder %s165, %s168
      %p174 = scmp.eq.s32.totalorder %s14, 0
      %p175 = por %p173, %p174
      %p176 = scmp.ne.s32.totalorder %s165, %s168
      %p177 = scmp.eq.s32.totalorder %s19, 1
      %p178 = por %p176, %p177
      %p179 = scmp.ne.s32.totalorder %s168, %s169
      %p180 = scmp.eq.s32.totalorder %s19, 0
      %p181 = por %p179, %p180
      %p182 = scmp.ne.s32.totalorder %s168, %s169
      %p183 = scmp.eq.s32.totalorder %s20, 1
      %p184 = por %p182, %p183
      %p186 = scmp.ne.s32.totalorder %s169, %s185
      %p187 = scmp.eq.s32.totalorder %s20, 0
      %p188 = por %p186, %p187
      %p189 = scmp.le.s32.totalorder 1, %s14
      %p190 = scmp.lt.s32.totalorder %s14, 3
      %p191 = pnand %p189, %p190
      %p192 = pneg %p191
      // Predicated region
      $region9: #{tpu_custom_call.1} parent=5 // pred_check
        _
      $region10: #{tpu_custom_call.1} parent=5 // pred_check_branch
        %194 = sbr.rel (%p191) target = $region12
      $region11: #{tpu_custom_call.1} parent=5 // pred_region
        %s195 = ssub.s32 %s14, 1
        // Predicated region
        $region13: #{tpu_custom_call.1} parent=11 // pred_check
          %p196 = pneg %p52
        $region14: #{tpu_custom_call.1} parent=11 // pred_check_branch
          %198 = sbr.rel (%p196) target = $region16
        $region15: #{tpu_custom_call.1} parent=11 // pred_region
          %p199 = scmp.lt.s32.totalorder %s23, 0
          %s200 = scalar_select %p199, %s23, 0
          %s201 = smul.addr %s200, 8
          %s202 = scalar_lea.vmem %s0, %s201
        $region16: #{tpu_custom_call.1} parent=11 // pred_fallthru
          _
        // Predicated region
        $region17: #{tpu_custom_call.1} parent=11 // pred_check
          %p203 = pneg %p78
        $region18: #{tpu_custom_call.1} parent=11 // pred_check_branch
          %205 = sbr.rel (%p203) target = $region20
        $region19: #{tpu_custom_call.1} parent=11 // pred_region
          %p206 = scmp.lt.s32.totalorder %s23, 0
          %s207 = scalar_select %p206, %s23, 0
          %s208 = smul.addr %s207, 8
          %s209 = scalar_lea.vmem %s1, %s208
        $region20: #{tpu_custom_call.1} parent=11 // pred_fallthru
          _
        // Predicated region
        $region21: #{tpu_custom_call.1} parent=11 // pred_check
          %p210 = pneg %p104
        $region22: #{tpu_custom_call.1} parent=11 // pred_check_branch
          %212 = sbr.rel (%p210) target = $region24
        $region23: #{tpu_custom_call.1} parent=11 // pred_region
          %p213 = scmp.lt.s32.totalorder %s23, 0
          %s214 = scalar_select %p213, %s23, 0
          %s215 = smul.addr %s214, 8
          %s216 = scalar_lea.vmem %s2, %s215
        $region24: #{tpu_custom_call.1} parent=11 // pred_fallthru
          _
        // Predicated region
        $region25: #{tpu_custom_call.1} parent=11 // pred_check
          %p217 = pneg %p125
        $region26: #{tpu_custom_call.1} parent=11 // pred_check_branch
          %219 = sbr.rel (%p217) target = $region28
        $region27: #{tpu_custom_call.1} parent=11 // pred_region
          _
        $region28: #{tpu_custom_call.1} parent=11 // pred_fallthru
          _
      $region12: #{tpu_custom_call.1} parent=5 // pred_fallthru
        _
      %p220 = scmp.lt.s32.totalorder %s14, 2
      // Predicated region
      $region29: #{tpu_custom_call.1} parent=5 // pred_check
        %p221 = pneg %p220
      $region30: #{tpu_custom_call.1} parent=5 // pred_check_branch
        %223 = sbr.rel (%p221) target = $region32
      $region31: #{tpu_custom_call.1} parent=5 // pred_region
        // Predicated region
        $region33: #{tpu_custom_call.1} parent=31 // pred_check
          %p224 = pneg %p147
        $region34: #{tpu_custom_call.1} parent=31 // pred_check_branch
          %226 = sbr.rel (%p224) target = $region36
        $region35: #{tpu_custom_call.1} parent=31 // pred_region
          %p227 = scmp.lt.s32.totalorder %s21, 0
          %s228 = scalar_select %p227, %s21, 0
          %p229 = scmp.lt.s32.totalorder %s22, 1
          %s230 = scalar_select %p229, %s22, 1
          %s231 = smul.addr %s228, 2
          %s232 = sadd.s32 %s230, %s231
          %s233 = smul.addr %s232, 8
          %s234 = scalar_lea.vmem %s4, %s233
        $region36: #{tpu_custom_call.1} parent=31 // pred_fallthru
          _
      $region32: #{tpu_custom_call.1} parent=5 // pred_fallthru
        _
      %p235 = scmp.le.s32.totalorder 1, %s14
      %p236 = scmp.lt.s32.totalorder %s14, 3
      %p237 = pnand %p235, %p236
      %p238 = pneg %p237
      // Predicated region
      $region37: #{tpu_custom_call.1} parent=5 // pred_check
        _
      $region38: #{tpu_custom_call.1} parent=5 // pred_check_branch
        %240 = sbr.rel (%p237) target = $region40
      $region39: #{tpu_custom_call.1} parent=5 // pred_region
        %s241 = ssub.s32 %s14, 1
        %p242 = scmp.lt.s32.totalorder %s23, 0
        %s243 = scalar_select %p242, %s23, 0
        %s244 = smul.addr %s243, 8
        %s245 = scalar_lea.vmem %s0, %s244
        %p246 = pneg %p52
        %p247 = pneg %p49
        %p248 = scmp.lt.s32.totalorder %s23, 0
        %s249 = scalar_select %p248, %s23, 0
        %s250 = smul.addr %s249, 8
        %s251 = scalar_lea.vmem %s1, %s250
        %p252 = pneg %p78
        %p253 = pneg %p75
        %p254 = scmp.lt.s32.totalorder %s23, 0
        %s255 = scalar_select %p254, %s23, 0
        %s256 = smul.addr %s255, 8
        %s257 = scalar_lea.vmem %s2, %s256
        %p258 = pneg %p104
        %p259 = pneg %p101
        %p260 = pneg %p125
        %p261 = pneg %p122
        %p262 = scmp.lt.s32.totalorder %s23, 0
        %s263 = scalar_select %p262, %s23, 0
        %p264 = scmp.lt.s32.totalorder %s24, 1
        %s265 = scalar_select %p264, %s24, 1
        %s266 = smul.addr %s263, 2
        %s267 = sadd.s32 %s265, %s266
        %s268 = smul.addr %s267, 8
        %s269 = scalar_lea.vmem %s4, %s268
        %p270 = pneg %p153
        %p271 = pneg %p150
        %p272 = pneg %p181
        %p273 = pneg %p178
        %s274 = sand.u32 %s168, 1
        %s275 = scalar_lea.sflag [#allocation3], %s274
        %s276 = sand.u32 %s168, 1
        %s277 = smul.addr %s276, 8
        %s278 = scalar_lea.vmem [#allocation2], %s277
        %p279 = scmp.lt.s32.totalorder %s23, 0
        %s280 = scalar_select %p279, %s23, 0
        %s281 = smul.addr %s280, 8
        %s282 = scalar_lea.vmem %s0, %s281
        %p283 = scmp.lt.s32.totalorder %s23, 0
        %s284 = scalar_select %p283, %s23, 0
        %s285 = smul.addr %s284, 8
        %s286 = scalar_lea.vmem %s1, %s285
        %p287 = scmp.lt.s32.totalorder %s23, 0
        %s288 = scalar_select %p287, %s23, 0
        %s289 = smul.addr %s288, 8
        %s290 = scalar_lea.vmem %s2, %s289
        %p291 = scmp.lt.s32.totalorder %s23, 0
        %s292 = scalar_select %p291, %s23, 0
        %p293 = scmp.lt.s32.totalorder %s24, 1
        %s294 = scalar_select %p293, %s24, 1
        %s295 = smul.addr %s292, 2
        %s296 = sadd.s32 %s294, %s295
        %s297 = smul.addr %s296, 8
        %s298 = scalar_lea.vmem %s4, %s297
        %v299 = vld [vmem:[%s298] sm:$0xff]
        %v300 = vld [vmem:[%s3] sm:$0xff]
        %vm301 = vcmask 64512
        %v303 = vsel %vm301, %v300, 0
        %305 = vmatprep.subr.mxu0 0.0
        %306 = vmatpush1.msra.mxu0 %v299
        %307 = vmatprep.subr.mxu0 0.0
        %308 = vmatpush1.msra.mxu0 0.0
        %309 = vmatprep.subr.mxu0 0.0
        %310 = vmatpush1.msra.mxu0 0.0
        %311 = vmatprep.subr.mxu0 0.0
        %312 = vmatpush1.msra.mxu0 0.0
        %313 = vmatprep.subr.mxu0 0.0
        %314 = vmatpush1.msra.mxu0 0.0
        %315 = vmatprep.subr.mxu0 0.0
        %316 = vmatpush1.msra.mxu0 0.0
        %317 = vmatprep.subr.mxu0 0.0
        %318 = vmatpush1.msra.mxu0 0.0
        %319 = vmatprep.subr.mxu0 0.0
        %320 = vmatpush1.msra.mxu0 0.0
        %321 = vmatprep.subr.mxu0 0.0
        %322 = vmatpush1.msra.mxu0 0.0
        %323 = vmatprep.subr.mxu0 0.0
        %324 = vmatpush1.msra.mxu0 0.0
        %325 = vmatprep.subr.mxu0 0.0
        %326 = vmatpush1.msra.mxu0 0.0
        %327 = vmatprep.subr.mxu0 0.0
        %328 = vmatpush1.msra.mxu0 0.0
        %329 = vmatprep.subr.mxu0 0.0
        %330 = vmatpush1.msra.mxu0 0.0
        %331 = vmatprep.subr.mxu0 0.0
        %332 = vmatpush1.msra.mxu0 0.0
        %333 = vmatprep.subr.mxu0 0.0
        %334 = vmatpush1.msra.mxu0 0.0
        %335 = vmatprep.subr.mxu0 0.0
        %336 = vmatpush1.msra.mxu0 0.0
        %337 = vmatprep.subr.mxu0 0.0
        %338 = vmatpush1.msra.mxu0 0.0
        %339 = vmatprep.subr.mxu0 0.0
        %340 = vmatpush1.msra.mxu0 0.0
        %341 = vmatprep.subr.mxu0 0.0
        %342 = vmatpush1.msra.mxu0 0.0
        %343 = vmatprep.subr.mxu0 0.0
        %344 = vmatpush1.msra.mxu0 0.0
        %345 = vmatprep.subr.mxu0 0.0
        %346 = vmatpush1.msra.mxu0 0.0
        %347 = vmatprep.subr.mxu0 0.0
        %348 = vmatpush1.msra.mxu0 0.0
        %349 = vmatprep.subr.mxu0 0.0
        %350 = vmatpush1.msra.mxu0 0.0
        %351 = vmatprep.subr.mxu0 0.0
        %352 = vmatpush1.msra.mxu0 0.0
        %353 = vmatprep.subr.mxu0 0.0
        %354 = vmatpush1.msra.mxu0 0.0
        %355 = vmatprep.subr.mxu0 0.0
        %356 = vmatpush1.msra.mxu0 0.0
        %357 = vmatprep.subr.mxu0 0.0
        %358 = vmatpush1.msra.mxu0 0.0
        %359 = vmatprep.subr.mxu0 0.0
        %360 = vmatpush1.msra.mxu0 0.0
        %361 = vmatprep.subr.mxu0 0.0
        %362 = vmatpush1.msra.mxu0 0.0
        %363 = vmatprep.subr.mxu0 0.0
        %364 = vmatpush1.msra.mxu0 0.0
        %365 = vmatprep.subr.mxu0 0.0
        %366 = vmatpush1.msra.mxu0 0.0
        %367 = vmatprep.subr.mxu0 0.0
        %368 = vmatpush1.msra.mxu0 0.0
        %369 = vmatprep.mubr.f32.mxu0 0.0
        %370 = vmatmul.mubr.f32.gmra.mrb[0].mxu0 %v303
        %v371 = vpop.f32.mrb[0].mxu0
        %v372 = vadd.f32 0.0, %v371
        %v373 = vpop.f32.mrb[0].mxu0
        %374 = vdwg.mxu0
        %v375 = vld [vmem:[%s282] sm:$0xff]
        %377 = vset.pattern.permute.xlu0 0
        %378 = vperm.xlu0 %377, %v375
        %v379 = vpop.permute.xlu0 %378
        %v381 = vmul.f32 %v379, %v372
        %v382 = vld [vmem:[%s286] sm:$0xff]
        %384 = vset.pattern.permute.xlu0 0
        %385 = vperm.xlu0 %384, %v382
        %v386 = vpop.permute.xlu0 %385
        %v388 = vadd.f32 %v381, %v386
        %v389 = vld [vmem:[%s290] sm:$0xff]
        %391 = vset.pattern.permute.xlu0 0
        %392 = vperm.xlu0 %391, %v389
        %v393 = vpop.permute.xlu0 %392
        %v395 = vmul.f32 %v393, %v299
        %v396 = vadd.f32 %v388, %v395
        %397 = vst [vmem:[%s278] sm:$0xff] %v396
        %s398 = sand.u32 %s168, 1
        %s399 = scalar_lea.sflag [#allocation3], %s398
        %s400 = sand.u32 %s168, 1
        %s401 = smul.addr %s400, 8
        %s402 = scalar_lea.vmem [#allocation2], %s401
        // Predicated region
        $region41: #{tpu_custom_call.1} parent=39 // pred_check
          %p403 = pneg %p178
        $region42: #{tpu_custom_call.1} parent=39 // pred_check_branch
          %405 = sbr.rel (%p403) target = $region44
        $region43: #{tpu_custom_call.1} parent=39 // pred_region
          %s407 = ssub.s32 128, 128
          %408 = vsyncadd %s399, %s407
          %s409 = smul.addr %s23, 2
          %s410 = sadd.s32 %s24, %s409
          %s411 = smul.addr %s410, 128
          %s412 = scalar_lea.hbm %s5, %s411
          %s414 = sshll.u32 %s402, 4
          %s415 = int_to_ptr.vmem [resolvable:$true] %s414
          %417 = dma.vmem_to_hbm [thread:$0]  %s415, 128, %s412, %s399
        $region44: #{tpu_custom_call.1} parent=39 // pred_fallthru
          _
      $region40: #{tpu_custom_call.1} parent=5 // pred_fallthru
        _
      %p418 = scmp.le.s32.totalorder 2, %s14
      // Predicated region
      $region45: #{tpu_custom_call.1} parent=5 // pred_check
        %p419 = pneg %p418
      $region46: #{tpu_custom_call.1} parent=5 // pred_check_branch
        %421 = sbr.rel (%p419) target = $region48
      $region47: #{tpu_custom_call.1} parent=5 // pred_region
        %s422 = ssub.s32 %s14, 2
        // Predicated region
        $region49: #{tpu_custom_call.1} parent=47 // pred_check
          %p423 = pneg %p184
        $region50: #{tpu_custom_call.1} parent=47 // pred_check_branch
          %425 = sbr.rel (%p423) target = $region52
        $region51: #{tpu_custom_call.1} parent=47 // pred_region
          %s426 = sand.u32 %s169, 1
          %s427 = scalar_lea.sflag [#allocation3], %s426
          %s428 = sand.u32 %s169, 1
          %s429 = smul.addr %s428, 8
          %s430 = scalar_lea.vmem [#allocation2], %s429
          %431 = dma.done %s427, 128
        $region52: #{tpu_custom_call.1} parent=47 // pred_fallthru
          _
      $region48: #{tpu_custom_call.1} parent=5 // pred_fallthru
        _
    $region6: #{tpu_custom_call.1} parent=1 // loop_footer
      %s18 = sadd.s32 1, %s14
    $region7: #{tpu_custom_call.1} parent=1 // loop_footer_branch
      %13 = sbr.rel target = $region3
    $region8: #{tpu_custom_call.1} parent=1 // loop_exit
      _
    %432 = vsyncpa [#allocation3], 1
    %s433 = scalar_lea.sflag [#allocation3], 1
    %434 = vsyncpa %s433, 1

</llo_original>
